<compile_context>
chip_gen: v5e
topology: v5e:2x2
jax: 0.10.0
libtpu: 0.0.40
codegen_flags: <defaults>
</compile_context>

<pallas_src>
import math

import jax
import jax.numpy as jnp
from jax.experimental import pallas as pl
from jax.experimental.pallas import tpu as pltpu


def _pe_add_kernel(pe_ref, x_ref, o_ref):
    """o = x + pe, with pe broadcast over the batch block.

    pe_ref: (s_blk, L) block of the precomputed positional-encoding table.
    x_ref / o_ref: (b_blk, s_blk, L) blocks of the (possibly lane-flattened) input.
    """
    o_ref[...] = x_ref[...] + pe_ref[...][None, :, :]


def _largest_divisor(n, cap, multiple_of=1):
    """Largest divisor of n that is <= cap and a multiple of `multiple_of` (None if none)."""
    cap = min(n, max(1, cap))
    for d in range(cap, 0, -1):
        if n % d == 0 and d % multiple_of == 0:
            return d
    return None


def _pick_blocks(B, Sr, L, itemsize):
    """Choose (b_blk, s_blk, vmem_limit_bytes) for the (B, Sr, L) streaming add."""
    try:
        vmem_cap = int(pltpu.get_tpu_info().vmem_capacity_bytes)
    except Exception:
        vmem_cap = 64 << 20  # conservative: v7x per-core VMEM

    # Scoped-VMEM we are willing to request (well under physical on every generation).
    vmem_target = min(40 << 20, max(vmem_cap // 2, 16 << 20))
    # Footprint ~ 4 * x_block (in + out, double-buffered) + 2 * pe_block + slack.
    budget = min(8 << 20, max((vmem_target - (2 << 20)) // 5, 256 << 10))

    row_bytes = L * itemsize
    # Dtype-aware sublane alignment: 8 rows for 4-byte, 16 for 2-byte, 32 for 1-byte.
    sub_align = 8 * max(1, 4 // max(1, itemsize))

    def pick_s(cap_rows):
        s = _largest_divisor(Sr, cap_rows, multiple_of=sub_align)
        if s is None and sub_align != 8:
            s = _largest_divisor(Sr, cap_rows, multiple_of=8)
        return s

    # 1) Keep the full batch per block if an aligned seq block still fits the budget.
    b_blk = B
    s_blk = pick_s(budget // max(1, B * row_bytes))

    if s_blk is None:
        # 2) Shrink the batch block until an aligned seq block fits.
        min_rows = min(Sr, sub_align)
        b_blk = _largest_divisor(B, budget // max(1, min_rows * row_bytes)) or 1
        s_blk = pick_s(budget // max(1, b_blk * row_bytes))

    if s_blk is None:
        # 3) Sr has no multiple-of-8 divisor (or nothing fits): use the full seq extent
        #    (a full-extent block is always legal) and shrink the batch block instead.
        s_blk = Sr
        b_blk = _largest_divisor(B, budget // max(1, Sr * row_bytes)) or 1

    # 4) Guarantee >= 2 grid steps so both v7x TensorCores get work.
    if (Sr // s_blk) * (B // b_blk) < 2:
        s_half = pick_s(s_blk // 2)
        if s_half is not None and s_half < s_blk:
            s_blk = s_half                               # split seq (pe never re-read)
        elif B >= 2:
            b_blk = _largest_divisor(B, B // 2) or b_blk  # split batch

    block_bytes = b_blk * s_blk * row_bytes
    pe_bytes = s_blk * row_bytes
    need = 4 * block_bytes + 2 * pe_bytes + (1 << 20)
    vmem_limit = None
    if need > (16 << 20):  # above the smallest scoped-VMEM default (v5e)
        vmem_limit = int(min(need + (2 << 20), vmem_cap - (4 << 20)))
    return b_blk, s_blk, vmem_limit


def _make_pe_table(S, D):
    """Exact mirror of the PyTorch module buffer (first S rows)."""
    position = jnp.arange(S, dtype=jnp.float32)[:, None]
    div_term = jnp.exp(
        jnp.arange(0, D, 2, dtype=jnp.float32) * (-math.log(10000.0) / D)
    )
    angles = position * div_term                       # (S, ceil(D/2))
    pe = jnp.zeros((S, D), dtype=jnp.float32)
    pe = pe.at[:, 0::2].set(jnp.sin(angles))
    pe = pe.at[:, 1::2].set(jnp.cos(angles)[:, : D // 2])
    return pe


def positional_encoding_add(x, *, donate_x=False):
    """x: (B, S, D) float array. Returns x + pe[None, :S, :] (PyTorch PositionalEncoding)."""
    B, S, D = x.shape
    pe = _make_pe_table(S, D).astype(x.dtype)

    # Lane-dense layout: if D is not 128-aligned but the row flattens evenly, reshape
    # (B, S, D) -> (B, S*D//128, 128) row-major (pe flattened identically) so stores
    # are full-width vst instead of masked vst.msk.
    if D % 128 == 0 or (S * D) % 128 != 0:
        L, Sr = D, S
        xk, pek = x, pe
    else:
        L = 128
        Sr = (S * D) // 128
        xk = x.reshape(B, Sr, L)
        pek = pe.reshape(Sr, L)

    b_blk, s_blk, vmem_limit = _pick_blocks(B, Sr, L, xk.dtype.itemsize)
    assert B % b_blk == 0 and Sr % s_blk == 0

    out = pl.pallas_call(
        _pe_add_kernel,
        out_shape=jax.ShapeDtypeStruct((B, Sr, L), x.dtype),
        grid_spec=pltpu.PrefetchScalarGridSpec(
            num_scalar_prefetch=0,
            # Batch is the inner grid axis: the pe block index is unchanged across it,
            # so the pipeline does not re-fetch pe between batch blocks.
            grid=(Sr // s_blk, B // b_blk),
            in_specs=[
                pl.BlockSpec((s_blk, L), lambda s, b: (s, 0)),             # pe table
                pl.BlockSpec((b_blk, s_blk, L), lambda s, b: (b, s, 0)),   # x
            ],
            out_specs=pl.BlockSpec((b_blk, s_blk, L), lambda s, b: (b, s, 0)),
        ),
        compiler_params=pltpu.CompilerParams(
            dimension_semantics=("parallel", "parallel"),
            vmem_limit_bytes=vmem_limit,
        ),
        # Note: on the lane-flattened path this aliases the reshaped array, so donation
        # may be ineffective if XLA materializes the reshape; default stays False.
        input_output_aliases=({1: 0} if donate_x else {}),
    )(pek, xk)

    return out.reshape(B, S, D)


def _reference(x):
    """Pure-JAX mirror of the PyTorch module for a correctness check."""
    B, S, D = x.shape
    position = jnp.arange(S, dtype=jnp.float32)[:, None]
    div_term = jnp.exp(
        jnp.arange(0, D, 2, dtype=jnp.float32) * (-math.log(10000.0) / D)
    )
    pe = jnp.zeros((S, D), dtype=jnp.float32)
    pe = pe.at[:, 0::2].set(jnp.sin(position * div_term))
    pe = pe.at[:, 1::2].set(jnp.cos(position * div_term)[:, : D // 2])
    return (x.astype(jnp.float32) + pe[None, :, :]).astype(x.dtype)


if __name__ == "__main__":
    key = jax.random.PRNGKey(0)

    # Primary shape (matches the module's (batch, seq_len, d_model) convention).
    B, S, D = 2, 8, 32
    x = jax.random.normal(key, (B, S, D), dtype=jnp.float32)
    out = jax.block_until_ready(positional_encoding_add(x))
    assert out.shape == (B, S, D)
    assert jnp.allclose(out, _reference(x), atol=1e-5, rtol=1e-5)

    # Also exercise the lane-aligned (D % 128 == 0) path with the same kernel.
    x2 = jax.random.normal(jax.random.PRNGKey(1), (2, 16, 128), dtype=jnp.float32)
    out2 = jax.block_until_ready(positional_encoding_add(x2))
    assert jnp.allclose(out2, _reference(x2), atol=1e-5, rtol=1e-5)

    print("KERNEL_OK")
</pallas_src>

<mosaic_0001>
module attributes {stable_mosaic.version = 11 : i64} {
  func.func @_pe_add_kernel(%arg0: i32, %arg1: i32, %arg2: memref<2x128xf32, #tpu.memory_space<vmem>>, %arg3: memref<1x2x128xf32, #tpu.memory_space<vmem>>, %arg4: memref<1x2x128xf32, #tpu.memory_space<vmem>>) attributes {dimension_semantics = [#tpu.dimension_semantics<parallel>, #tpu.dimension_semantics<parallel>], iteration_bounds = array<i64: 1, 2>, scalar_prefetch = 0 : i64, scratch_operands = 0 : i64, tpu.core_type = #tpu.core_type<tc>, window_params = [{transform_indices = @transform_0, window_bounds = array<i64: 2, 128>}, {transform_indices = @transform_1, window_bounds = array<i64: 1, 2, 128>}, {transform_indices = @transform_2, window_bounds = array<i64: 1, 2, 128>}]} {
    %c0 = arith.constant 0 : index
    %c0_0 = arith.constant 0 : index
    %c0_1 = arith.constant 0 : index
    %0 = vector.load %arg3[%c0, %c0_0, %c0_1] : memref<1x2x128xf32, #tpu.memory_space<vmem>>, vector<1x2x128xf32>
    %c0_2 = arith.constant 0 : index
    %c0_3 = arith.constant 0 : index
    %1 = vector.load %arg2[%c0_2, %c0_3] : memref<2x128xf32, #tpu.memory_space<vmem>>, vector<2x128xf32>
    %2 = vector.shape_cast %1 : vector<2x128xf32> to vector<1x2x128xf32>
    %3 = arith.addf %0, %2 : vector<1x2x128xf32>
    %c0_4 = arith.constant 0 : index
    %c0_5 = arith.constant 0 : index
    %c0_6 = arith.constant 0 : index
    %4 = vector.load %arg4[%c0_4, %c0_5, %c0_6] : memref<1x2x128xf32, #tpu.memory_space<vmem>>, vector<1x2x128xf32>
    tpu.vector_store %arg4[%c0_4, %c0_5, %c0_6], %3 {strides = array<i32>} : memref<1x2x128xf32, #tpu.memory_space<vmem>>, vector<1x2x128xf32>,
    return
  }
  func.func @transform_0(%arg0: i32, %arg1: i32) -> (i32, i32) {
    %c0_i32 = arith.constant 0 : i32
    %c0_i32_0 = arith.constant 0 : i32
    return %arg0, %c0_i32 : i32, i32
  }
  func.func @transform_1(%arg0: i32, %arg1: i32) -> (i32, i32, i32) {
    %c0_i32 = arith.constant 0 : i32
    %c0_i32_0 = arith.constant 0 : i32
    return %arg1, %arg0, %c0_i32 : i32, i32, i32
  }
  func.func @transform_2(%arg0: i32, %arg1: i32) -> (i32, i32, i32) {
    %c0_i32 = arith.constant 0 : i32
    %c0_i32_0 = arith.constant 0 : i32
    return %arg1, %arg0, %c0_i32 : i32, i32, i32
  }
}

</mosaic_0001>

<llo_original>
// kernel: tpu_custom_call.1
$region0: #{tpu_custom_call.1}
  #allocation0 [shape = 'u32[]', space=smem, size = 0x4, offset = 0x4, fixed_abs, tag = 'smem constant byte address 0x4 - core index']
  #allocation1 [shape = 'u32[72,128]{1,0:T(1,128)}', space=vmem, size = 0x9000, scoped, tag = 'internal scratch']
  %s0 = inlined_call_operand.hbm [shape: f32[2,128], index: 0, kind: input, shape index: {}]
  %s1 = inlined_call_operand.hbm [shape: f32[2,2,128], index: 1, kind: input, shape index: {}]
  %s2 = inlined_call_operand.hbm [shape: f32[2,2,128], index: 2, kind: output, shape index: {}]
  %s3 = sld [smem:[#allocation0]]
  $region49: #{tpu_custom_call.1} parent=0
    _
  %s5 = ssub.s32 1, %s3
  %s6 = scalar_select 0, %s5, %s3
  $region1: #{tpu_custom_call.1} parent=0
    #allocation2 [shape = 'u8[1024]{0}', space=vmem, size = 0x400, scoped, tag = 'input window, operand 0, single buffered']
    #allocation3 [shape = 's32[2]{0}', space=sflag, size = 0x8, scoped, tag = 'scoped memory for tpu_custom_call.1']
    #allocation4 [shape = 's32[2]{0}', space=sflag, size = 0x8, scoped, tag = 'scoped memory for tpu_custom_call.1']
    #allocation5 [shape = 'u8[2048]{0}', space=vmem, size = 0x800, scoped, tag = 'input window, operand 1']
    #allocation6 [shape = 's32[2]{0}', space=sflag, size = 0x8, scoped, tag = 'scoped memory for tpu_custom_call.1']
    #allocation7 [shape = 'u8[2048]{0}', space=vmem, size = 0x800, scoped, tag = 'output window, operand 0']
    %7 = vsyncpa [#allocation3], 0
    %8 = vsyncpa [#allocation6], 0
    %s9 = scalar_lea.sflag [#allocation6], 1
    %10 = vsyncpa %s9, 0
    %11 = vsyncpa [#allocation4], 0
    %s12 = scalar_lea.sflag [#allocation4], 1
    %13 = vsyncpa %s12, 0
    loop: start=0, step=1, limit=4
    $region2: #{tpu_custom_call.1} parent=1 // loop_pre_header
      _
    $region3: #{tpu_custom_call.1} parent=1 // loop_header
      %s15 = sphi 0, %s19
      %p16 = scmp.ge.s32.totalorder %s15, 4
      %s22 = sphi 0, %s34
      %s23 = sphi 0, %s30
      %s24 = sphi 0, %s22
      %s25 = sphi 0, %s23
      %s26 = sphi 0, %s24
      %s27 = sphi 0, %s25
      %s37 = sphi 0, %s39
      %s40 = sphi 0, %s37
      %s41 = sphi 0, %s40
      %s57 = sphi 0, %s41
      %s65 = sphi 0, %s67
      %s68 = sphi 0, %s65
      %s69 = sphi 0, %s68
      %s85 = sphi 0, %s69
      %s93 = sphi 0, %s95
      %s96 = sphi 0, %s93
      %s97 = sphi 0, %s96
      %s113 = sphi 0, %s97
    $region4: #{tpu_custom_call.1} parent=1 // loop_header_branch
      %18 = sbr.rel (%p16) target = $region8
    $region5: #{tpu_custom_call.1} parent=1 // loop_body
      %s20 = ssub.s32 %s15, 1
      %s21 = ssub.s32 %s15, 2
      %s28 = sadd.s32 1, %s23
      %p29 = scmp.ge.s32.totalorder %s28, 2
      %s30 = scalar_select %p29, 0, %s28
      %s31 = sadd.s32 1, %s22
      %s32 = scalar_select %p29, %s31, %s22
      %p33 = scmp.ge.s32.totalorder %s32, 1
      %s34 = scalar_select %p33, 0, %s32
      %s35 = ssub.s32 %s22, %s34
      %p36 = scmp.eq.s32.totalorder %s35, 0
      %s38 = sadd.s32 %s37, 1
      %s39 = scalar_select %p36, %s37, %s38
      %p42 = pneg %p36
      %p43 = scmp.eq.s32.totalorder %s15, 1
      %p44 = por %p42, %p43
      %p45 = scmp.ne.s32.totalorder %s37, %s40
      %p46 = scmp.eq.s32.totalorder %s15, 0
      %p47 = por %p45, %p46
      %p48 = scmp.ne.s32.totalorder %s37, %s40
      %p49 = scmp.eq.s32.totalorder %s20, 1
      %p50 = por %p48, %p49
      %p51 = scmp.ne.s32.totalorder %s40, %s41
      %p52 = scmp.eq.s32.totalorder %s20, 0
      %p53 = por %p51, %p52
      %p54 = scmp.ne.s32.totalorder %s40, %s41
      %p55 = scmp.eq.s32.totalorder %s21, 1
      %p56 = por %p54, %p55
      %p58 = scmp.ne.s32.totalorder %s41, %s57
      %p59 = scmp.eq.s32.totalorder %s21, 0
      %p60 = por %p58, %p59
      %s61 = ssub.s32 %s23, %s30
      %s62 = ssub.s32 %s22, %s34
      %s63 = sor.u32 %s61, %s62
      %p64 = scmp.eq.s32.totalorder %s63, 0
      %s66 = sadd.s32 %s65, 1
      %s67 = scalar_select %p64, %s65, %s66
      %p70 = pneg %p64
      %p71 = scmp.eq.s32.totalorder %s15, 1
      %p72 = por %p70, %p71
      %p73 = scmp.ne.s32.totalorder %s65, %s68
      %p74 = scmp.eq.s32.totalorder %s15, 0
      %p75 = por %p73, %p74
      %p76 = scmp.ne.s32.totalorder %s65, %s68
      %p77 = scmp.eq.s32.totalorder %s20, 1
      %p78 = por %p76, %p77
      %p79 = scmp.ne.s32.totalorder %s68, %s69
      %p80 = scmp.eq.s32.totalorder %s20, 0
      %p81 = por %p79, %p80
      %p82 = scmp.ne.s32.totalorder %s68, %s69
      %p83 = scmp.eq.s32.totalorder %s21, 1
      %p84 = por %p82, %p83
      %p86 = scmp.ne.s32.totalorder %s69, %s85
      %p87 = scmp.eq.s32.totalorder %s21, 0
      %p88 = por %p86, %p87
      %s89 = ssub.s32 %s23, %s30
      %s90 = ssub.s32 %s22, %s34
      %s91 = sor.u32 %s89, %s90
      %p92 = scmp.eq.s32.totalorder %s91, 0
      %s94 = sadd.s32 %s93, 1
      %s95 = scalar_select %p92, %s93, %s94
      %p98 = pneg %p92
      %p99 = scmp.eq.s32.totalorder %s15, 1
      %p100 = por %p98, %p99
      %p101 = scmp.ne.s32.totalorder %s93, %s96
      %p102 = scmp.eq.s32.totalorder %s15, 0
      %p103 = por %p101, %p102
      %p104 = scmp.ne.s32.totalorder %s93, %s96
      %p105 = scmp.eq.s32.totalorder %s20, 1
      %p106 = por %p104, %p105
      %p107 = scmp.ne.s32.totalorder %s96, %s97
      %p108 = scmp.eq.s32.totalorder %s20, 0
      %p109 = por %p107, %p108
      %p110 = scmp.ne.s32.totalorder %s96, %s97
      %p111 = scmp.eq.s32.totalorder %s21, 1
      %p112 = por %p110, %p111
      %p114 = scmp.ne.s32.totalorder %s97, %s113
      %p115 = scmp.eq.s32.totalorder %s21, 0
      %p116 = por %p114, %p115
      %p117 = scmp.le.s32.totalorder 1, %s15
      %p118 = scmp.lt.s32.totalorder %s15, 3
      %p119 = pnand %p117, %p118
      %p120 = pneg %p119
      // Predicated region
      $region9: #{tpu_custom_call.1} parent=5 // pred_check
        _
      $region10: #{tpu_custom_call.1} parent=5 // pred_check_branch
        %122 = sbr.rel (%p119) target = $region12
      $region11: #{tpu_custom_call.1} parent=5 // pred_region
        %s123 = ssub.s32 %s15, 1
        // Predicated region
        $region13: #{tpu_custom_call.1} parent=11 // pred_check
          %p124 = pneg %p53
        $region14: #{tpu_custom_call.1} parent=11 // pred_check_branch
          %126 = sbr.rel (%p124) target = $region16
        $region15: #{tpu_custom_call.1} parent=11 // pred_region
          %128 = vsyncadd [#allocation3], 0
          %s129 = smul.addr %s24, 2
          %s130 = scalar_lea.hbm %s0, %s129
          %s132 = sshll.u32 %s130, 4
          %s133 = int_to_ptr.hbm [resolvable:$true] %s132
          %s134 = sshll.u32 [#allocation2], 4
          %s135 = int_to_ptr.vmem [resolvable:$true] %s134
          %137 = dma.hbm_to_vmem [thread:$0]  %s133, 32, %s135, [#allocation3]
        $region16: #{tpu_custom_call.1} parent=11 // pred_fallthru
          _
      $region12: #{tpu_custom_call.1} parent=5 // pred_fallthru
        _
      %p138 = scmp.lt.s32.totalorder %s15, 2
      // Predicated region
      $region17: #{tpu_custom_call.1} parent=5 // pred_check
        %p139 = pneg %p138
      $region18: #{tpu_custom_call.1} parent=5 // pred_check_branch
        %141 = sbr.rel (%p139) target = $region20
      $region19: #{tpu_custom_call.1} parent=5 // pred_region
        // Predicated region
        $region21: #{tpu_custom_call.1} parent=19 // pred_check
          %p142 = pneg %p75
        $region22: #{tpu_custom_call.1} parent=19 // pred_check_branch
          %144 = sbr.rel (%p142) target = $region24
        $region23: #{tpu_custom_call.1} parent=19 // pred_region
          %s145 = sand.u32 %s65, 1
          %s146 = scalar_lea.sflag [#allocation6], %s145
          %s147 = sand.u32 %s65, 1
          %s148 = smul.addr %s147, 2
          %s149 = scalar_lea.vmem [#allocation5], %s148
          %151 = vsyncadd %s146, 0
          %s152 = sadd.s32 %s22, %s23
          %s153 = smul.addr %s152, 2
          %s154 = scalar_lea.hbm %s1, %s153
          %s156 = sshll.u32 %s154, 4
          %s157 = int_to_ptr.hbm [resolvable:$true] %s156
          %s158 = sshll.u32 %s149, 4
          %s159 = int_to_ptr.vmem [resolvable:$true] %s158
          %161 = dma.hbm_to_vmem [thread:$0]  %s157, 32, %s159, %s146
        $region24: #{tpu_custom_call.1} parent=19 // pred_fallthru
          _
      $region20: #{tpu_custom_call.1} parent=5 // pred_fallthru
        _
      %p162 = scmp.le.s32.totalorder 1, %s15
      %p163 = scmp.lt.s32.totalorder %s15, 3
      %p164 = pnand %p162, %p163
      %p165 = pneg %p164
      // Predicated region
      $region25: #{tpu_custom_call.1} parent=5 // pred_check
        _
      $region26: #{tpu_custom_call.1} parent=5 // pred_check_branch
        %167 = sbr.rel (%p164) target = $region28
      $region27: #{tpu_custom_call.1} parent=5 // pred_region
        %s168 = ssub.s32 %s15, 1
        // Predicated region
        $region29: #{tpu_custom_call.1} parent=27 // pred_check
          %p169 = pneg %p53
        $region30: #{tpu_custom_call.1} parent=27 // pred_check_branch
          %171 = sbr.rel (%p169) target = $region32
        $region31: #{tpu_custom_call.1} parent=27 // pred_region
          %173 = dma.done [#allocation3], 32
        $region32: #{tpu_custom_call.1} parent=27 // pred_fallthru
          _
        %s174 = sand.u32 %s68, 1
        %s175 = scalar_lea.sflag [#allocation6], %s174
        %s176 = sand.u32 %s68, 1
        %s177 = smul.addr %s176, 2
        %s178 = scalar_lea.vmem [#allocation5], %s177
        // Predicated region
        $region33: #{tpu_custom_call.1} parent=27 // pred_check
          %p179 = pneg %p81
        $region34: #{tpu_custom_call.1} parent=27 // pred_check_branch
          %181 = sbr.rel (%p179) target = $region36
        $region35: #{tpu_custom_call.1} parent=27 // pred_region
          %183 = dma.done %s175, 32
        $region36: #{tpu_custom_call.1} parent=27 // pred_fallthru
          _
        %p184 = pneg %p53
        %p185 = pneg %p50
        %s186 = sand.u32 %s68, 1
        %s187 = scalar_lea.sflag [#allocation6], %s186
        %s188 = sand.u32 %s68, 1
        %s189 = smul.addr %s188, 2
        %s190 = scalar_lea.vmem [#allocation5], %s189
        %p191 = pneg %p81
        %p192 = pneg %p78
        %p193 = pneg %p109
        %p194 = pneg %p106
        %s195 = sand.u32 %s96, 1
        %s196 = scalar_lea.sflag [#allocation4], %s195
        %s197 = sand.u32 %s96, 1
        %s198 = smul.addr %s197, 2
        %s199 = scalar_lea.vmem [#allocation7], %s198
        %v200 = vld [vmem:[%s178] sm:$0x3]
        %v201 = vld [vmem:[#allocation2] sm:$0x3]
        %v202 = vadd.f32 %v200, %v201
        %203 = vst [vmem:[%s199] sm:$0x3] %v202
        %s204 = sand.u32 %s96, 1
        %s205 = scalar_lea.sflag [#allocation4], %s204
        %s206 = sand.u32 %s96, 1
        %s207 = smul.addr %s206, 2
        %s208 = scalar_lea.vmem [#allocation7], %s207
        // Predicated region
        $region37: #{tpu_custom_call.1} parent=27 // pred_check
          %p209 = pneg %p106
        $region38: #{tpu_custom_call.1} parent=27 // pred_check_branch
          %211 = sbr.rel (%p209) target = $region40
        $region39: #{tpu_custom_call.1} parent=27 // pred_region
          %213 = vsyncadd %s205, 0
          %s214 = sadd.s32 %s24, %s25
          %s215 = smul.addr %s214, 2
          %s216 = scalar_lea.hbm %s2, %s215
          %s218 = sshll.u32 %s208, 4
          %s219 = int_to_ptr.vmem [resolvable:$true] %s218
          %s220 = sshll.u32 %s216, 4
          %s221 = int_to_ptr.hbm [resolvable:$true] %s220
          %223 = dma.vmem_to_hbm [thread:$0]  %s219, 32, %s221, %s205
        $region40: #{tpu_custom_call.1} parent=27 // pred_fallthru
          _
      $region28: #{tpu_custom_call.1} parent=5 // pred_fallthru
        _
      %p224 = scmp.le.s32.totalorder 2, %s15
      // Predicated region
      $region41: #{tpu_custom_call.1} parent=5 // pred_check
        %p225 = pneg %p224
      $region42: #{tpu_custom_call.1} parent=5 // pred_check_branch
        %227 = sbr.rel (%p225) target = $region44
      $region43: #{tpu_custom_call.1} parent=5 // pred_region
        %s228 = ssub.s32 %s15, 2
        // Predicated region
        $region45: #{tpu_custom_call.1} parent=43 // pred_check
          %p229 = pneg %p112
        $region46: #{tpu_custom_call.1} parent=43 // pred_check_branch
          %231 = sbr.rel (%p229) target = $region48
        $region47: #{tpu_custom_call.1} parent=43 // pred_region
          %s232 = sand.u32 %s97, 1
          %s233 = scalar_lea.sflag [#allocation4], %s232
          %s234 = sand.u32 %s97, 1
          %s235 = smul.addr %s234, 2
          %s236 = scalar_lea.vmem [#allocation7], %s235
          %238 = dma.done %s233, 32
        $region48: #{tpu_custom_call.1} parent=43 // pred_fallthru
          _
      $region44: #{tpu_custom_call.1} parent=5 // pred_fallthru
        _
    $region6: #{tpu_custom_call.1} parent=1 // loop_footer
      %s19 = sadd.s32 1, %s15
    $region7: #{tpu_custom_call.1} parent=1 // loop_footer_branch
      %14 = sbr.rel target = $region3
    $region8: #{tpu_custom_call.1} parent=1 // loop_exit
      _
    %239 = vsyncpa [#allocation3], 1
    %s240 = scalar_lea.sflag [#allocation3], 1
    %241 = vsyncpa %s240, 1
    %242 = vsyncpa [#allocation6], 1
    %s243 = scalar_lea.sflag [#allocation6], 1
    %244 = vsyncpa %s243, 1
    %245 = vsyncpa [#allocation4], 1
    %s246 = scalar_lea.sflag [#allocation4], 1
    %247 = vsyncpa %s246, 1

</llo_original>
